<compile_context>
chip_gen: v6e
topology: v6e:2x2x1
jax: 0.10.0
libtpu: 0.0.40
codegen_flags: <defaults>
</compile_context>

<pallas_src>
import functools

import jax
import jax.numpy as jnp
from jax import lax
from jax.experimental import pallas as pl
from jax.experimental.pallas import tpu as pltpu


def _rmsnorm_f32(x, g, eps):
    """rmsnorm_func semantics: f32 math, scale by gamma; caller casts back."""
    xf = x.astype(jnp.float32)
    var = jnp.mean(xf * xf, axis=-1, keepdims=True)
    return g.astype(jnp.float32) * (xf * lax.rsqrt(var + eps))


def _lm_head_kernel_rows_outer(x_ref, g_ref, w_ref, o_ref, h_ref, *, eps):
    """grid = (row_tiles, vocab_tiles): row tile is resident across the inner
    vocab axis, so RMSNorm is computed once (first vocab tile) and cached in a
    VMEM scratch; the inner loop is pure MXU + weight DMA."""
    @pl.when(pl.program_id(1) == 0)
    def _():
        h_ref[...] = _rmsnorm_f32(x_ref[...], g_ref[...], eps).astype(h_ref.dtype)

    o_ref[...] = lax.dot_general(
        h_ref[...],
        w_ref[...],
        dimension_numbers=(((1,), (1,)), ((), ())),   # contract D; W stays [V, D]
        preferred_element_type=jnp.float32,
    ).astype(o_ref.dtype)


def _lm_head_kernel_vocab_outer(x_ref, g_ref, w_ref, o_ref, *, eps):
    """grid = (vocab_tiles, row_tiles): the weight tile is resident across the
    inner rows axis (the [V, D] weight streams from HBM exactly once); RMSNorm is
    recomputed per block, negligible next to the (tm, D) x (D, tv) matmul."""
    h = _rmsnorm_f32(x_ref[...], g_ref[...], eps).astype(x_ref.dtype)
    o_ref[...] = lax.dot_general(
        h,
        w_ref[...],
        dimension_numbers=(((1,), (1,)), ((), ())),
        preferred_element_type=jnp.float32,
    ).astype(o_ref.dtype)


def glm2_lm_head(features, norm_weight, proj_weight, *, eps=1e-6,
                 tile_m=256, tile_v=512,
                 vmem_budget_bytes=40 * 1024 * 1024):
    """features: [..., D]; norm_weight: [D]; proj_weight: [V, D] (PyTorch layout).

    Returns logits [..., V].
    """
    *batch, D = features.shape
    V, Dw = proj_weight.shape
    assert Dw == D, "proj_weight must be [vocab, dim]"
    N = 1
    for b in batch:
        N *= int(b)

    x = features.reshape(N, D)
    g = norm_weight.reshape(1, D)
    w = proj_weight

    x_item = jnp.dtype(features.dtype).itemsize
    w_item = jnp.dtype(proj_weight.dtype).itemsize
    o_item = x_item

    def vmem_bytes(tm_, tv_):
        return (2 * tm_ * D * x_item        # x tile (double-buffered)
                + 2 * tv_ * D * w_item      # W tile (double-buffered)
                + 2 * tm_ * tv_ * o_item    # out tile (double-buffered)
                + 2 * D * x_item            # gamma
                + tm_ * D * x_item)         # cached rmsnorm(x) scratch

    tm, tv = tile_m, tile_v
    # Shrink for very large D so double-buffering fits the VMEM budget.
    while vmem_bytes(tm, tv) > vmem_budget_bytes and (tm > 64 or tv > 256):
        if tv > 256:
            tv //= 2
        else:
            tm //= 2
    # Grow while there is headroom: bigger row tiles -> fewer re-reads of the
    # [V, D] weight; bigger vocab tiles -> fewer grid steps, lane-dense stores.
    while tm < 1024 and 2 * tm <= N and vmem_bytes(2 * tm, tv) <= vmem_budget_bytes:
        tm *= 2
    while tv < 1024 and 2 * tv <= V and vmem_bytes(tm, 2 * tv) <= vmem_budget_bytes:
        tv *= 2
    # Clamp to the problem: a full-extent block is always layout-legal; partial
    # edge blocks are masked by Pallas, so no padding copies are materialized.
    if N < tm:
        tm = N
    if V < tv:
        tv = V

    grid_m = pl.cdiv(N, tm)
    grid_v = pl.cdiv(V, tv)

    # Pick the grid order that minimizes HBM traffic of the re-read operand.
    rows_outer_bytes = N * D * x_item + grid_m * V * D * w_item
    vocab_outer_bytes = grid_v * N * D * x_item + V * D * w_item
    rows_outer = rows_outer_bytes <= vocab_outer_bytes
    out_bytes = N * V * o_item

    if rows_outer:
        kernel = functools.partial(_lm_head_kernel_rows_outer, eps=float(eps))
        grid = (grid_m, grid_v)
        in_specs = [
            pl.BlockSpec((tm, D), lambda i, j: (i, 0)),   # activations
            pl.BlockSpec((1, D), lambda i, j: (0, 0)),    # gamma
            pl.BlockSpec((tv, D), lambda i, j: (j, 0)),   # weight ([V, D] layout)
        ]
        out_specs = pl.BlockSpec((tm, tv), lambda i, j: (i, j))
        scratch_shapes = [pltpu.VMEM((tm, D), features.dtype)]
        dims = ("parallel", "arbitrary")        # vocab axis carries cached h
        transcendentals = N
        bytes_accessed = rows_outer_bytes + out_bytes
    else:
        kernel = functools.partial(_lm_head_kernel_vocab_outer, eps=float(eps))
        grid = (grid_v, grid_m)
        in_specs = [
            pl.BlockSpec((tm, D), lambda j, i: (i, 0)),
            pl.BlockSpec((1, D), lambda j, i: (0, 0)),
            pl.BlockSpec((tv, D), lambda j, i: (j, 0)),
        ]
        out_specs = pl.BlockSpec((tm, tv), lambda j, i: (i, j))
        scratch_shapes = []
        dims = ("parallel", "parallel")         # every block independent
        transcendentals = N * grid_v
        bytes_accessed = vocab_outer_bytes + out_bytes

    vmem_limit = min(64 * 1024 * 1024,
                     max(32 * 1024 * 1024, (vmem_bytes(tm, tv) * 3) // 2))

    cost = pl.CostEstimate(
        flops=2 * N * D * V,
        transcendentals=transcendentals,
        bytes_accessed=bytes_accessed,
    )

    out = pl.pallas_call(
        kernel,
        out_shape=jax.ShapeDtypeStruct((N, V), features.dtype),
        grid_spec=pltpu.PrefetchScalarGridSpec(
            num_scalar_prefetch=0,
            grid=grid,
            in_specs=in_specs,
            out_specs=out_specs,
            scratch_shapes=scratch_shapes,
        ),
        compiler_params=pltpu.CompilerParams(
            dimension_semantics=dims,
            vmem_limit_bytes=vmem_limit,
        ),
        cost_estimate=cost,
    )(x, g, w)

    return out.reshape(*batch, V)


def _reference(features, norm_weight, proj_weight, eps=1e-6):
    x = features.astype(jnp.float32)
    var = jnp.mean(x * x, axis=-1, keepdims=True)
    xn = x * lax.rsqrt(var + eps)
    h = (norm_weight.astype(jnp.float32) * xn).astype(features.dtype)
    return h @ proj_weight.T


if __name__ == "__main__":
    # Small config consistent with the module: dim=128, vocab=256, batch=2, seq=8.
    B, S, D, VOCAB = 2, 8, 128, 256
    EPS = 1e-6

    key = jax.random.PRNGKey(0)
    k_feat, k_norm, k_proj = jax.random.split(key, 3)

    features = jax.random.normal(k_feat, (B, S, D), dtype=jnp.float32)
    # Deterministic synthetic params (no checkpoint): RMSNorm weight ~ ones +
    # small perturbation; projection ~ normal / sqrt(D).
    norm_weight = jnp.ones((D,), jnp.float32) + 0.01 * jax.random.normal(
        k_norm, (D,), dtype=jnp.float32)
    proj_weight = jax.random.normal(k_proj, (VOCAB, D), dtype=jnp.float32) / jnp.sqrt(D)

    logits = glm2_lm_head(features, norm_weight, proj_weight, eps=EPS)
    logits = jax.block_until_ready(logits)

    ref = _reference(features, norm_weight, proj_weight, eps=EPS)
    assert logits.shape == (B, S, VOCAB)
    assert jnp.allclose(logits, ref, atol=1e-4, rtol=1e-4), "mismatch vs reference"

    print("KERNEL_OK")
</pallas_src>

<mosaic_0001>
module attributes {stable_mosaic.version = 11 : i64} {
  func.func @_lm_head_kernel_rows_outer(%arg0: i32, %arg1: i32, %arg2: memref<16x128xf32, #tpu.memory_space<vmem>>, %arg3: memref<1x128xf32, #tpu.memory_space<vmem>>, %arg4: memref<256x128xf32, #tpu.memory_space<vmem>>, %arg5: memref<16x256xf32, #tpu.memory_space<vmem>>, %arg6: memref<16x128xf32, #tpu.memory_space<vmem>>) attributes {dimension_semantics = [#tpu.dimension_semantics<parallel>, #tpu.dimension_semantics<arbitrary>], iteration_bounds = array<i64: 1, 1>, scalar_prefetch = 0 : i64, scratch_operands = 1 : i64, tpu.core_type = #tpu.core_type<tc>, window_params = [{transform_indices = @transform_0, window_bounds = array<i64: 16, 128>}, {pipeline_mode = #tpu.pipeline_mode<synchronous>, transform_indices = @transform_1, window_bounds = array<i64: 1, 128>}, {transform_indices = @transform_2, window_bounds = array<i64: 256, 128>}, {transform_indices = @transform_3, window_bounds = array<i64: 16, 256>}]} {
    %c0_i32 = arith.constant 0 : i32
    %0 = arith.cmpi eq, %arg1, %c0_i32 : i32
    %1 = arith.extui %0 : i1 to i32
    %c0_i32_0 = arith.constant 0 : i32
    %2 = arith.cmpi ne, %1, %c0_i32_0 : i32
    scf.if %2 {
      %c0_6 = arith.constant 0 : index
      %c0_7 = arith.constant 0 : index
      %7 = vector.load %arg2[%c0_6, %c0_7] : memref<16x128xf32, #tpu.memory_space<vmem>>, vector<16x128xf32>
      %c0_8 = arith.constant 0 : index
      %c0_9 = arith.constant 0 : index
      %8 = vector.load %arg3[%c0_8, %c0_9] : memref<1x128xf32, #tpu.memory_space<vmem>>, vector<1x128xf32>
      %9 = arith.mulf %7, %7 : vector<16x128xf32>
      %cst_10 = arith.constant dense<0.000000e+00> : vector<16xf32>
      %10 = vector.multi_reduction <add>, %9, %cst_10 [1] : vector<16x128xf32> to vector<16xf32>
      %11 = vector.shape_cast %10 : vector<16xf32> to vector<16x1xf32>
      %cst_11 = arith.constant 1.280000e+02 : f32
      %12 = vector.broadcast %cst_11 : f32 to vector<16x1xf32>
      %13 = arith.divf %11, %12 : vector<16x1xf32>
      %cst_12 = arith.constant 9.99999997E-7 : f32
      %14 = vector.broadcast %cst_12 : f32 to vector<16x1xf32>
      %15 = arith.addf %13, %14 : vector<16x1xf32>
      %16 = math.rsqrt %15 : vector<16x1xf32>
      %17 = vector.broadcast %16 : vector<16x1xf32> to vector<16x128xf32>
      %18 = arith.mulf %7, %17 : vector<16x128xf32>
      %19 = vector.broadcast %8 : vector<1x128xf32> to vector<16x128xf32>
      %20 = arith.mulf %19, %18 : vector<16x128xf32>
      %c0_13 = arith.constant 0 : index
      %c0_14 = arith.constant 0 : index
      %21 = vector.load %arg6[%c0_13, %c0_14] : memref<16x128xf32, #tpu.memory_space<vmem>>, vector<16x128xf32>
      tpu.vector_store %arg6[%c0_13, %c0_14], %20 {strides = array<i32>} : memref<16x128xf32, #tpu.memory_space<vmem>>, vector<16x128xf32>,
    } else {
    }
    %c0 = arith.constant 0 : index
    %c0_1 = arith.constant 0 : index
    %3 = vector.load %arg6[%c0, %c0_1] : memref<16x128xf32, #tpu.memory_space<vmem>>, vector<16x128xf32>
    %c0_2 = arith.constant 0 : index
    %c0_3 = arith.constant 0 : index
    %4 = vector.load %arg4[%c0_2, %c0_3] : memref<256x128xf32, #tpu.memory_space<vmem>>, vector<256x128xf32>
    %cst = arith.constant dense<0.000000e+00> : vector<16x256xf32>
    %5 = tpu.matmul %3, %4, %cst {dimension_numbers = #tpu.dot_dimension_numbers<[1], [1], [0], [0], [0, 0, 1, 0], [], []>} : vector<16x128xf32>, vector<256x128xf32>, vector<16x256xf32> -> vector<16x256xf32>
    %c0_4 = arith.constant 0 : index
    %c0_5 = arith.constant 0 : index
    %6 = vector.load %arg5[%c0_4, %c0_5] : memref<16x256xf32, #tpu.memory_space<vmem>>, vector<16x256xf32>
    tpu.vector_store %arg5[%c0_4, %c0_5], %5 {strides = array<i32>} : memref<16x256xf32, #tpu.memory_space<vmem>>, vector<16x256xf32>,
    return
  }
  func.func @transform_0(%arg0: i32, %arg1: i32) -> (i32, i32) {
    %c0_i32 = arith.constant 0 : i32
    %c0_i32_0 = arith.constant 0 : i32
    return %arg0, %c0_i32 : i32, i32
  }
  func.func @transform_1(%arg0: i32, %arg1: i32) -> (i32, i32) {
    %c0_i32 = arith.constant 0 : i32
    %c0_i32_0 = arith.constant 0 : i32
    %c0_i32_1 = arith.constant 0 : i32
    return %c0_i32, %c0_i32_0 : i32, i32
  }
  func.func @transform_2(%arg0: i32, %arg1: i32) -> (i32, i32) {
    %c0_i32 = arith.constant 0 : i32
    %c0_i32_0 = arith.constant 0 : i32
    return %arg1, %c0_i32 : i32, i32
  }
  func.func @transform_3(%arg0: i32, %arg1: i32) -> (i32, i32) {
    %c0_i32 = arith.constant 0 : i32
    return %arg0, %arg1 : i32, i32
  }
}

</mosaic_0001>

<llo_original>
// kernel: tpu_custom_call.1
$region0: #{tpu_custom_call.1}
  #allocation0 [shape = 'u32[]', space=smem, size = 0x4, offset = 0x4, fixed_abs, tag = 'smem constant byte address 0x4 - core index']
  #allocation1 [shape = 'u32[144,128]{1,0:T(1,128)}', space=vmem, size = 0x12000, scoped, tag = 'internal scratch']
  #allocation2 [shape = 'f32[16,128]{1,0:T(8,128)}', space=vmem, size = 0x2000, scoped, tag = 'scratch operand']
  %s0 = inlined_call_operand.hbm [shape: f32[16,128], index: 0, kind: input, shape index: {}]
  %s1 = inlined_call_operand.vmem [shape: f32[1,128], index: 1, kind: input, shape index: {}]
  %s2 = inlined_call_operand.hbm [shape: f32[256,128], index: 2, kind: input, shape index: {}]
  %s3 = inlined_call_operand.hbm [shape: f32[16,256], index: 3, kind: output, shape index: {}]
  %s4 = sld [smem:[#allocation0]]
  $region34: #{tpu_custom_call.1} parent=0
    _
  %s6 = ssub.s32 1, %s4
  %s7 = scalar_select 0, %s6, %s4
  $region1: #{tpu_custom_call.1} parent=0
    #allocation3 [shape = 'u8[8192]{0}', space=vmem, size = 0x2000, scoped, tag = 'input window, operand 0, single buffered']
    #allocation4 [shape = 's32[1]{0}', space=sflag, size = 0x4, scoped, tag = 'scoped memory for tpu_custom_call.1']
    #allocation5 [shape = 's32[1]{0}', space=sflag, size = 0x4, scoped, tag = 'scoped memory for tpu_custom_call.1']
    #allocation6 [shape = 'u8[131072]{0}', space=vmem, size = 0x20000, scoped, tag = 'input window, operand 2, single buffered']
    #allocation7 [shape = 's32[1]{0}', space=sflag, size = 0x4, scoped, tag = 'scoped memory for tpu_custom_call.1']
    #allocation8 [shape = 'u8[16384]{0}', space=vmem, size = 0x4000, scoped, tag = 'output window, operand 0, single buffered']
    %8 = vsyncpa [#allocation4], 0
    %9 = vsyncpa [#allocation7], 0
    %10 = vsyncpa [#allocation5], 0
    // Predicated region
    $region2: #{tpu_custom_call.1} parent=1 // pred_check
      _
    $region3: #{tpu_custom_call.1} parent=1 // pred_check_branch
      %12 = sbr.rel (0) target = $region5
    $region4: #{tpu_custom_call.1} parent=1 // pred_region
      %s14 = ssub.s32 256, 256
      %15 = vsyncadd [#allocation4], %s14
      %s16 = sshll.u32 [#allocation3], 4
      %s17 = int_to_ptr.vmem [resolvable:$true] %s16
      %22 = dma.hbm_to_vmem [thread:$0]  %s0, 256, %s17, [#allocation4], 128, 128, 8
    $region5: #{tpu_custom_call.1} parent=1 // pred_fallthru
      _
    // Predicated region
    $region6: #{tpu_custom_call.1} parent=1 // pred_check
      _
    $region7: #{tpu_custom_call.1} parent=1 // pred_check_branch
      %24 = sbr.rel (0) target = $region9
    $region8: #{tpu_custom_call.1} parent=1 // pred_region
      _
    $region9: #{tpu_custom_call.1} parent=1 // pred_fallthru
      _
    // Predicated region
    $region10: #{tpu_custom_call.1} parent=1 // pred_check
      _
    $region11: #{tpu_custom_call.1} parent=1 // pred_check_branch
      %26 = sbr.rel (0) target = $region13
    $region12: #{tpu_custom_call.1} parent=1 // pred_region
      %s28 = ssub.s32 4096, 4096
      %29 = vsyncadd [#allocation7], %s28
      %s30 = sshll.u32 [#allocation6], 4
      %s31 = int_to_ptr.vmem [resolvable:$true] %s30
      %36 = dma.hbm_to_vmem [thread:$0]  %s2, 4096, %s31, [#allocation7], 128, 128, 8
    $region13: #{tpu_custom_call.1} parent=1 // pred_fallthru
      _
    // Predicated region
    $region14: #{tpu_custom_call.1} parent=1 // pred_check
      _
    $region15: #{tpu_custom_call.1} parent=1 // pred_check_branch
      %38 = sbr.rel (0) target = $region17
    $region16: #{tpu_custom_call.1} parent=1 // pred_region
      %39 = dma.done [#allocation4], 256
    $region17: #{tpu_custom_call.1} parent=1 // pred_fallthru
      _
    // Predicated region
    $region18: #{tpu_custom_call.1} parent=1 // pred_check
      _
    $region19: #{tpu_custom_call.1} parent=1 // pred_check_branch
      %41 = sbr.rel (0) target = $region21
    $region20: #{tpu_custom_call.1} parent=1 // pred_region
      %42 = dma.done [#allocation7], 4096
    $region21: #{tpu_custom_call.1} parent=1 // pred_fallthru
      _
    %p43 = scmp.eq.s32.totalorder 0, 0
    // Predicated region
    $region22: #{tpu_custom_call.1} parent=1 // pred_check
      %p44 = pneg %p43
    $region23: #{tpu_custom_call.1} parent=1 // pred_check_branch
      %46 = sbr.rel (%p44) target = $region25
    $region24: #{tpu_custom_call.1} parent=1 // pred_region
      %v47 = vld [vmem:[#allocation3] sm:$0xff]
      %v48 = vld [vmem:[#allocation3 + $0x8] sm:$0xff]
      %v49 = vld [vmem:[%s1] sm:$0x1]
      %v50 = vmul.f32 %v47, %v47
      %v51 = vmul.f32 %v48, %v48
      %52 = vadd.xlane.f32.xlu0 %v50
      %v53 = vpop.xlane.xlu0 %52
      %54 = vadd.xlane.f32.xlu0 %v51
      %v55 = vpop.xlane.xlu0 %54
      %v56 = vrcp.pop 128.0
      %v57 = vmul.f32 %v53, %v56
      %v58 = vmul.f32 %v55, %v56
      %v59 = vadd.f32 %v57, 1e-06
      %v60 = vadd.f32 %v58, 1e-06
      %v61 = vrsqrt.pop %v59
      %v62 = vrsqrt.pop %v60
      %v63 = vmul.f32 %v47, %v61
      %v64 = vmul.f32 %v48, %v62
      %v66 = vlaneseq
      %v67 = vshrl.u32 %v66, 7
      %v68 = vsub.s32 0, %v67
      %v69 = vrot.slane %v49, %v68
      %v71 = vmul.f32 %v69, %v63
      %v72 = vmul.f32 %v69, %v64
      %73 = vst [vmem:[#allocation2] sm:$0xff] %v71
      %74 = vst [vmem:[#allocation2 + $0x8] sm:$0xff] %v72
    $region25: #{tpu_custom_call.1} parent=1 // pred_fallthru
      _
    %v75 = vld [vmem:[#allocation2] sm:$0xff]
    %v76 = vld [vmem:[#allocation2 + $0x8] sm:$0xff]
    %v77 = vld [vmem:[#allocation6] sm:$0xff]
    %v78 = vld [vmem:[#allocation6 + $0x8] sm:$0xff]
    %v79 = vld [vmem:[#allocation6 + $0x10] sm:$0xff]
    %v80 = vld [vmem:[#allocation6 + $0x18] sm:$0xff]
    %v81 = vld [vmem:[#allocation6 + $0x20] sm:$0xff]
    %v82 = vld [vmem:[#allocation6 + $0x28] sm:$0xff]
    %v83 = vld [vmem:[#allocation6 + $0x30] sm:$0xff]
    %v84 = vld [vmem:[#allocation6 + $0x38] sm:$0xff]
    %v85 = vld [vmem:[#allocation6 + $0x40] sm:$0xff]
    %v86 = vld [vmem:[#allocation6 + $0x48] sm:$0xff]
    %v87 = vld [vmem:[#allocation6 + $0x50] sm:$0xff]
    %v88 = vld [vmem:[#allocation6 + $0x58] sm:$0xff]
    %v89 = vld [vmem:[#allocation6 + $0x60] sm:$0xff]
    %v90 = vld [vmem:[#allocation6 + $0x68] sm:$0xff]
    %v91 = vld [vmem:[#allocation6 + $0x70] sm:$0xff]
    %v92 = vld [vmem:[#allocation6 + $0x78] sm:$0xff]
    %v93 = vld [vmem:[#allocation6 + $0x80] sm:$0xff]
    %v94 = vld [vmem:[#allocation6 + $0x88] sm:$0xff]
    %v95 = vld [vmem:[#allocation6 + $0x90] sm:$0xff]
    %v96 = vld [vmem:[#allocation6 + $0x98] sm:$0xff]
    %v97 = vld [vmem:[#allocation6 + $0xa0] sm:$0xff]
    %v98 = vld [vmem:[#allocation6 + $0xa8] sm:$0xff]
    %v99 = vld [vmem:[#allocation6 + $0xb0] sm:$0xff]
    %v100 = vld [vmem:[#allocation6 + $0xb8] sm:$0xff]
    %v101 = vld [vmem:[#allocation6 + $0xc0] sm:$0xff]
    %v102 = vld [vmem:[#allocation6 + $0xc8] sm:$0xff]
    %v103 = vld [vmem:[#allocation6 + $0xd0] sm:$0xff]
    %v104 = vld [vmem:[#allocation6 + $0xd8] sm:$0xff]
    %v105 = vld [vmem:[#allocation6 + $0xe0] sm:$0xff]
    %v106 = vld [vmem:[#allocation6 + $0xe8] sm:$0xff]
    %v107 = vld [vmem:[#allocation6 + $0xf0] sm:$0xff]
    %v108 = vld [vmem:[#allocation6 + $0xf8] sm:$0xff]
    %109 = vmatprep.subr.mxu0 0.0
    %110 = vmatpush1.xpose.msra.mxu0 %v92
    %111 = vmatprep.subr.mxu0 0.0
    %112 = vmatpush1.xpose.msra.mxu0 %v91
    %113 = vmatprep.subr.mxu0 0.0
    %114 = vmatpush1.xpose.msra.mxu0 %v90
    %115 = vmatprep.subr.mxu0 0.0
    %116 = vmatpush1.xpose.msra.mxu0 %v89
    %117 = vmatprep.subr.mxu0 0.0
    %118 = vmatpush1.xpose.msra.mxu0 %v88
    %119 = vmatprep.subr.mxu0 0.0
    %120 = vmatpush1.xpose.msra.mxu0 %v87
    %121 = vmatprep.subr.mxu0 0.0
    %122 = vmatpush1.xpose.msra.mxu0 %v86
    %123 = vmatprep.subr.mxu0 0.0
    %124 = vmatpush1.xpose.msra.mxu0 %v85
    %125 = vmatprep.subr.mxu0 0.0
    %126 = vmatpush1.xpose.msra.mxu0 %v84
    %127 = vmatprep.subr.mxu0 0.0
    %128 = vmatpush1.xpose.msra.mxu0 %v83
    %129 = vmatprep.subr.mxu0 0.0
    %130 = vmatpush1.xpose.msra.mxu0 %v82
    %131 = vmatprep.subr.mxu0 0.0
    %132 = vmatpush1.xpose.msra.mxu0 %v81
    %133 = vmatprep.subr.mxu0 0.0
    %134 = vmatpush1.xpose.msra.mxu0 %v80
    %135 = vmatprep.subr.mxu0 0.0
    %136 = vmatpush1.xpose.msra.mxu0 %v79
    %137 = vmatprep.subr.mxu0 0.0
    %138 = vmatpush1.xpose.msra.mxu0 %v78
    %139 = vmatprep.subr.mxu0 0.0
    %140 = vmatpush1.xpose.msra.mxu0 %v77
    %141 = vmatprep.subr.mxu0 0.0
    %142 = vmatpush2.xpose.msra.mxu0 %v108
    %143 = vmatprep.subr.mxu0 0.0
    %144 = vmatpush2.xpose.msra.mxu0 %v107
    %145 = vmatprep.subr.mxu0 0.0
    %146 = vmatpush2.xpose.msra.mxu0 %v106
    %147 = vmatprep.subr.mxu0 0.0
    %148 = vmatpush2.xpose.msra.mxu0 %v105
    %149 = vmatprep.subr.mxu0 0.0
    %150 = vmatpush2.xpose.msra.mxu0 %v104
    %151 = vmatprep.subr.mxu0 0.0
    %152 = vmatpush2.xpose.msra.mxu0 %v103
    %153 = vmatprep.subr.mxu0 0.0
    %154 = vmatpush2.xpose.msra.mxu0 %v102
    %155 = vmatprep.subr.mxu0 0.0
    %156 = vmatpush2.xpose.msra.mxu0 %v101
    %157 = vmatprep.subr.mxu0 0.0
    %158 = vmatpush2.xpose.msra.mxu0 %v100
    %159 = vmatprep.subr.mxu0 0.0
    %160 = vmatpush2.xpose.msra.mxu0 %v99
    %161 = vmatprep.subr.mxu0 0.0
    %162 = vmatpush2.xpose.msra.mxu0 %v98
    %163 = vmatprep.subr.mxu0 0.0
    %164 = vmatpush2.xpose.msra.mxu0 %v97
    %165 = vmatprep.subr.mxu0 0.0
    %166 = vmatpush2.xpose.msra.mxu0 %v96
    %167 = vmatprep.subr.mxu0 0.0
    %168 = vmatpush2.xpose.msra.mxu0 %v95
    %169 = vmatprep.subr.mxu0 0.0
    %170 = vmatpush2.xpose.msra.mxu0 %v94
    %171 = vmatprep.subr.mxu0 0.0
    %172 = vmatpush2.xpose.msra.mxu0 %v93
    %173 = vmatprep.mubr.f32.mxu0 0.0
    %174 = vmatmul.mubr.f32.gmra.mxu0 %v75
    %v175 = vpop.f32.mrf.mxu0
    %v176 = vadd.f32 0.0, %v175
    %v177 = vpop.f32.mrf.mxu0
    %v178 = vadd.f32 0.0, %v177
    %179 = vmatprep.mubr.f32.mxu0 0.0
    %180 = vmatmul.mubr.f32.gmra.mxu0 %v76
    %v181 = vpop.f32.mrf.mxu0
    %v182 = vadd.f32 0.0, %v181
    %v183 = vpop.f32.mrf.mxu0
    %v184 = vadd.f32 0.0, %v183
    %185 = vdwg.mxu0
    %186 = vst [vmem:[#allocation8] sm:$0xff] %v176
    %187 = vst [vmem:[#allocation8 + $0x8] sm:$0xff] %v178
    %188 = vst [vmem:[#allocation8 + $0x10] sm:$0xff] %v182
    %189 = vst [vmem:[#allocation8 + $0x18] sm:$0xff] %v184
    // Predicated region
    $region26: #{tpu_custom_call.1} parent=1 // pred_check
      _
    $region27: #{tpu_custom_call.1} parent=1 // pred_check_branch
      %191 = sbr.rel (0) target = $region29
    $region28: #{tpu_custom_call.1} parent=1 // pred_region
      %s193 = ssub.s32 512, 512
      %194 = vsyncadd [#allocation5], %s193
      %s195 = sshll.u32 [#allocation8], 4
      %s196 = int_to_ptr.vmem [resolvable:$true] %s195
      %201 = dma.vmem_to_hbm [thread:$0]  %s196, 512, %s3, [#allocation5], 256, 256, 16
    $region29: #{tpu_custom_call.1} parent=1 // pred_fallthru
      _
    // Predicated region
    $region30: #{tpu_custom_call.1} parent=1 // pred_check
      _
    $region31: #{tpu_custom_call.1} parent=1 // pred_check_branch
      %203 = sbr.rel (0) target = $region33
    $region32: #{tpu_custom_call.1} parent=1 // pred_region
      %204 = dma.done [#allocation5], 512
    $region33: #{tpu_custom_call.1} parent=1 // pred_fallthru
      _
    %205 = vsyncpa [#allocation4], 1
    %206 = vsyncpa [#allocation7], 1
    %207 = vsyncpa [#allocation5], 1

</llo_original>
